<compile_context>
chip_gen: v7x
topology: tpu7x:2x2x1
jax: 0.10.0
libtpu: 0.0.40
codegen_flags: <defaults>
</compile_context>

<pallas_src>
import math

import jax
import jax.numpy as jnp
from jax.experimental import pallas as pl
from jax.experimental.pallas import tpu as pltpu


HALO = 128                 # lane-aligned halo block width (left/right neighbors)
FOLD_CIN_THRESHOLD = 128   # fold K into the contraction only below this C_in


def bid_speech_prenet_forward(input_):
    """Literal Bid_SpeechPrenet.forward: returns its input unchanged."""
    return input_


def _round_up(x, m):
    return ((x + m - 1) // m) * m


def _make_conv1d_kernel(*, K, P, L_in, tile_l, compute_dtype, fold,
                        has_left, has_right):
    """Builds the kernel body for one (batch, C_out-block, L-tile) grid point."""

    def kernel(*refs):
        i = 0
        x_left_ref = None
        x_right_ref = None
        if has_left:
            x_left_ref = refs[i]
            i += 1
        x_cur_ref = refs[i]
        i += 1
        if has_right:
            x_right_ref = refs[i]
            i += 1
        w_ref, b_ref, o_ref = refs[i], refs[i + 1], refs[i + 2]

        l = pl.program_id(2)
        tile_start = l * tile_l          # global input column of cur[:, 0]

        def load_masked(ref, width, start):
            # Fuses the conv zero-padding and the edge/partial-block masking
            # with the compute-dtype cast: any column whose global index falls
            # outside [0, L_in) becomes an exact zero (this implements the
            # conv's left/right zero pad AND neutralizes the undefined contents
            # of Pallas' clamped / partial edge blocks).  Cheap VPU work.
            cols = jax.lax.broadcasted_iota(jnp.int32, (1, width), 1) + start
            valid = (cols >= 0) & (cols < L_in)
            return jnp.where(valid, ref[0].astype(compute_dtype), 0)

        cur = load_masked(x_cur_ref, tile_l, tile_start)
        left = (load_masked(x_left_ref, HALO, tile_start - HALO)
                if has_left else None)
        right = (load_masked(x_right_ref, HALO, tile_start + tile_l)
                 if has_right else None)

        def tap(d):
            # Operand for tap offset d = k - P: columns [d, d + tile_l) of the
            # virtual window [left | cur | right].  d == 0 is copy-free.
            if d == 0:
                return cur
            if d > 0:
                return jnp.concatenate([cur[:, d:], right[:, :d]], axis=1)
            return jnp.concatenate([left[:, d:], cur[:, :tile_l + d]], axis=1)

        if fold:
            # Small C_in: fold the K taps into one deep MXU contraction
            # (K*C_in deep); the cols copy is tiny at these channel counts.
            taps = [tap(k - P) for k in range(K)]
            cols_mat = taps[0] if K == 1 else jnp.concatenate(taps, axis=0)
            acc = jnp.dot(w_ref[...], cols_mat,
                          preferred_element_type=jnp.float32)
        else:
            # Large C_in: per-tap accumulation -- K matmuls into one f32
            # accumulator; no (K*C_in, TILE_L) temporary, no sublane concat.
            acc = jnp.dot(w_ref[0], tap(-P), preferred_element_type=jnp.float32)
            for k in range(1, K):
                acc = acc + jnp.dot(w_ref[k], tap(k - P),
                                    preferred_element_type=jnp.float32)

        # Thin f32 epilogue: bias add + cast; lane-dense (C_out, TILE_L) store.
        o_ref[0] = (acc + b_ref[...]).astype(o_ref.dtype)

    return kernel


def conv1d_pallas(x_ncl, weight, bias, *, padding,
                  compute_dtype=jnp.bfloat16, max_tile_l=2048,
                  fold_taps=None, vmem_budget_bytes=40 << 20):
    """nn.Conv1d(stride=1, dilation=1, bias=True) forward in NCL layout.

    x_ncl:  (N, C_in, L) ; weight: (C_out, C_in, K) ; bias: (C_out,)
    returns (N, C_out, L_out) with L_out = L + 2*padding - K + 1.

    compute_dtype: MXU operand dtype (default bf16; accumulation is always f32,
                   output keeps x_ncl.dtype).  Pass jnp.float32 / None for
                   full-precision operands.
    fold_taps:     None = auto (fold for C_in < 128, per-tap otherwise).
    """
    N, C_in, L = x_ncl.shape
    C_out, wc_in, K = weight.shape
    assert wc_in == C_in
    P = int(padding)
    L_out = L + 2 * P - K + 1
    assert L_out > 0
    assert P <= HALO and (K - 1 - P) <= HALO, "halo blocks are 128 wide"

    if compute_dtype is None:
        compute_dtype = x_ncl.dtype
    compute_dtype = jnp.dtype(compute_dtype)
    out_dtype = x_ncl.dtype

    fold = bool(fold_taps) if fold_taps is not None else (C_in < FOLD_CIN_THRESHOLD)
    has_left = P > 0
    has_right = (K - 1 - P) > 0

    # ---- C_out blocking: extra parallel grid axis so both v7x TensorCores get
    #      work even when N * num_tiles is small (weights stay block-resident).
    if C_out >= 512 and C_out % 256 == 0:
        tile_co = 256
    else:
        tile_co = C_out
    num_co = C_out // tile_co

    # ---- L tiling: lane-aligned, as large as the VMEM budget allows.
    max_tile_l = max(HALO, (max_tile_l // HALO) * HALO)
    tile_l = min(max_tile_l, _round_up(L_out, HALO))

    x_isz = x_ncl.dtype.itemsize
    c_isz = compute_dtype.itemsize
    halo_w = (HALO if has_left else 0) + (HALO if has_right else 0)

    def _step_bytes(tl):
        # double-buffered DMA blocks + in-kernel temporaries (generous estimate)
        io = 2 * (C_in * (tl + halo_w) * x_isz + tile_co * tl * x_isz)
        wgt = 2 * (tile_co * K * C_in * c_isz + tile_co * 4)
        tmp = C_in * (tl + halo_w) * c_isz                      # masked/cast pieces
        tmp += (K if fold else 2) * C_in * tl * c_isz           # cols / live taps
        tmp += tile_co * tl * 4                                 # f32 accumulator
        return io + wgt + tmp

    while tile_l > HALO and _step_bytes(tile_l) > vmem_budget_bytes:
        tile_l -= HALO

    num_tiles = pl.cdiv(L_out, tile_l)
    ratio = tile_l // HALO
    nb_halo = pl.cdiv(L, HALO)      # 128-wide blocks of x along L
    nb_cur = pl.cdiv(L, tile_l)     # tile_l-wide blocks of x along L

    # ---- parameters in MXU layout.  Weights are cast to the compute dtype in
    #      the wrapper (tiny); activations are cast in-kernel so no extra
    #      full-array HBM pass is introduced for single-use f32 inputs.
    if fold:
        # W_fold[o, k*C_in + c] = weight[o, c, k]  (matches cols row order)
        w_dev = jnp.transpose(weight, (0, 2, 1)).reshape(C_out, K * C_in)
        w_dev = w_dev.astype(compute_dtype)
        w_spec = pl.BlockSpec((tile_co, K * C_in), lambda n, co, l: (co, 0))
    else:
        # W_taps[k] = weight[:, :, k]  -> (K, C_out, C_in)
        w_dev = jnp.transpose(weight, (2, 0, 1)).astype(compute_dtype)
        w_spec = pl.BlockSpec((K, tile_co, C_in), lambda n, co, l: (0, co, 0))
    b_dev = bias.astype(jnp.float32).reshape(C_out, 1)
    b_spec = pl.BlockSpec((tile_co, 1), lambda n, co, l: (co, 0))

    # ---- input views of the *unpadded* x: left halo / current tile / right
    #      halo.  Edge blocks use clamped block indices; correctness comes from
    #      the in-kernel column masks (pretend offsets), so no jnp.pad HBM pass
    #      and no output slice are needed.
    in_specs, args = [], []
    if has_left:
        in_specs.append(pl.BlockSpec(
            (1, C_in, HALO),
            lambda n, co, l: (n, 0, jnp.clip(l * ratio - 1, 0, nb_halo - 1))))
        args.append(x_ncl)
    in_specs.append(pl.BlockSpec(
        (1, C_in, tile_l),
        lambda n, co, l: (n, 0, jnp.minimum(l, nb_cur - 1))))
    args.append(x_ncl)
    if has_right:
        in_specs.append(pl.BlockSpec(
            (1, C_in, HALO),
            lambda n, co, l: (n, 0, jnp.minimum((l + 1) * ratio, nb_halo - 1))))
        args.append(x_ncl)
    in_specs += [w_spec, b_spec]
    args += [w_dev, b_dev]

    kernel = _make_conv1d_kernel(
        K=K, P=P, L_in=L, tile_l=tile_l, compute_dtype=compute_dtype,
        fold=fold, has_left=has_left, has_right=has_right)

    step_bytes = _step_bytes(tile_l)
    # Explicit scoped-VMEM limit: above v5e's 16 MiB default, within v7x's
    # 64 MiB physical.
    vmem_limit = int(min(64 << 20, max(32 << 20, step_bytes + (16 << 20))))

    cost = pl.CostEstimate(
        flops=int(2 * N * L_out * K * C_in * C_out),
        transcendentals=0,
        bytes_accessed=int(
            N * num_co * num_tiles * C_in * (tile_l + halo_w) * x_isz   # in + halo re-reads
            + num_co * w_dev.size * w_dev.dtype.itemsize + C_out * 4    # params
            + N * C_out * L_out * out_dtype.itemsize),                  # out
    )

    out = pl.pallas_call(
        kernel,
        out_shape=jax.ShapeDtypeStruct((N, C_out, L_out), out_dtype),
        grid=(N, num_co, num_tiles),
        in_specs=in_specs,
        out_specs=pl.BlockSpec((1, tile_co, tile_l), lambda n, co, l: (n, co, l)),
        compiler_params=pltpu.CompilerParams(
            dimension_semantics=("parallel", "parallel", "parallel"),
            vmem_limit_bytes=vmem_limit),
        cost_estimate=cost,
    )(*args)
    return out


def init_conv_params(key, in_channels, out_channels, kernel_size):
    """Deterministic param init matching the PyTorch Conv module's __init__."""
    kw, kb = jax.random.split(key)
    # xavier_uniform_ with gain = calculate_gain('linear') = 1.0
    fan_in = in_channels * kernel_size
    fan_out = out_channels * kernel_size
    bound_w = math.sqrt(6.0 / (fan_in + fan_out))
    weight = jax.random.uniform(
        kw, (out_channels, in_channels, kernel_size),
        minval=-bound_w, maxval=bound_w, dtype=jnp.float32)
    # PyTorch Conv1d default bias init: U(-1/sqrt(fan_in), 1/sqrt(fan_in))
    bound_b = 1.0 / math.sqrt(fan_in)
    bias = jax.random.uniform(
        kb, (out_channels,), minval=-bound_b, maxval=bound_b, dtype=jnp.float32)
    return weight, bias


if __name__ == "__main__":
    key = jax.random.PRNGKey(0)
    keys = jax.random.split(key, 6)

    def ref_conv(x, w, b, pad):
        return jax.lax.conv_general_dilated(
            x, w, window_strides=(1,), padding=[(pad, pad)],
            dimension_numbers=("NCH", "OIH", "NCH")) + b[None, :, None]

    # Case 1: small prenet conv, folded-tap path, exact f32 MXU operands.
    N, C_in, C_out, L, K, pad = 2, 4, 8, 16, 3, 1
    x = jax.random.normal(keys[0], (N, C_in, L), dtype=jnp.float32)
    w, b = init_conv_params(keys[1], C_in, C_out, K)
    out = jax.block_until_ready(
        conv1d_pallas(x, w, b, padding=pad, compute_dtype=jnp.float32))
    ref = ref_conv(x, w, b, pad)
    assert out.shape == ref.shape == (N, C_out, L)
    assert jnp.allclose(out, ref, atol=1e-4, rtol=1e-5)

    # Case 2: longer utterance, multi-tile (left+right halos, partial last
    # tile), per-tap accumulation path forced, exact f32 MXU operands.
    N2, C2_in, C2_out, L2, K2, pad2 = 2, 4, 8, 700, 5, 2
    x2 = jax.random.normal(keys[2], (N2, C2_in, L2), dtype=jnp.float32)
    w2, b2 = init_conv_params(keys[3], C2_in, C2_out, K2)
    out2 = jax.block_until_ready(
        conv1d_pallas(x2, w2, b2, padding=pad2, compute_dtype=jnp.float32,
                      max_tile_l=256, fold_taps=False))
    ref2 = ref_conv(x2, w2, b2, pad2)
    assert out2.shape == ref2.shape == (N2, C2_out, L2)
    assert jnp.allclose(out2, ref2, atol=1e-4, rtol=1e-5)

    # Case 3: default path (bf16 MXU operands, f32 accumulation, large tile).
    out3 = jax.block_until_ready(conv1d_pallas(x2, w2, b2, padding=pad2))
    assert out3.shape == ref2.shape
    assert jnp.allclose(out3, ref2, atol=5e-2, rtol=5e-2)

    # Case 4: pointwise conv (K=1, no halo blocks at all).
    w4, b4 = init_conv_params(keys[4], C_in, C_out, 1)
    out4 = jax.block_until_ready(
        conv1d_pallas(x, w4, b4, padding=0, compute_dtype=jnp.float32))
    ref4 = ref_conv(x, w4, b4, 0)
    assert out4.shape == ref4.shape == (N, C_out, L)
    assert jnp.allclose(out4, ref4, atol=1e-4, rtol=1e-5)

    # The module's own forward() is the identity.
    assert bid_speech_prenet_forward(x) is x

    print("KERNEL_OK")
</pallas_src>

<mosaic_0001>
module attributes {stable_mosaic.version = 11 : i64} {
  func.func @kernel(%arg0: i32, %arg1: i32, %arg2: i32, %arg3: memref<1x4x128xf32, #tpu.memory_space<vmem>>, %arg4: memref<1x4x128xf32, #tpu.memory_space<vmem>>, %arg5: memref<1x4x128xf32, #tpu.memory_space<vmem>>, %arg6: memref<8x12xf32, #tpu.memory_space<vmem>>, %arg7: memref<8x1xf32, #tpu.memory_space<vmem>>, %arg8: memref<1x8x128xf32, #tpu.memory_space<vmem>>) attributes {dimension_semantics = [#tpu.dimension_semantics<parallel>, #tpu.dimension_semantics<parallel>, #tpu.dimension_semantics<parallel>], iteration_bounds = array<i64: 2, 1, 1>, scalar_prefetch = 0 : i64, scratch_operands = 0 : i64, tpu.core_type = #tpu.core_type<tc>, window_params = [{transform_indices = @transform_0, window_bounds = array<i64: 1, 4, 128>}, {transform_indices = @transform_1, window_bounds = array<i64: 1, 4, 128>}, {transform_indices = @transform_2, window_bounds = array<i64: 1, 4, 128>}, {transform_indices = @transform_3, window_bounds = array<i64: 8, 12>}, {transform_indices = @transform_4, window_bounds = array<i64: 8, 1>}, {transform_indices = @transform_5, window_bounds = array<i64: 1, 8, 128>}]} {
    %c128_i32 = arith.constant 128 : i32
    %0 = arith.muli %arg2, %c128_i32 : i32
    %1 = tpu.iota {dimensions = array<i32: 1>} : vector<1x128xi32>
    %2 = vector.broadcast %0 : i32 to vector<1x128xi32>
    %3 = arith.addi %1, %2 : vector<1x128xi32>
    %c0_i32 = arith.constant 0 : i32
    %4 = vector.broadcast %c0_i32 : i32 to vector<1x128xi32>
    %5 = arith.cmpi sge, %3, %4 : vector<1x128xi32>
    %c16_i32 = arith.constant 16 : i32
    %6 = vector.broadcast %c16_i32 : i32 to vector<1x128xi32>
    %7 = arith.cmpi slt, %3, %6 : vector<1x128xi32>
    %8 = arith.andi %5, %7 : vector<1x128xi1>
    %c0 = arith.constant 0 : index
    %c0_0 = arith.constant 0 : index
    %c0_1 = arith.constant 0 : index
    %9 = vector.load %arg4[%c0, %c0_0, %c0_1] : memref<1x4x128xf32, #tpu.memory_space<vmem>>, vector<1x4x128xf32>
    %10 = vector.shape_cast %9 : vector<1x4x128xf32> to vector<4x128xf32>
    %c0_i32_2 = arith.constant 0 : i32
    %11 = arith.sitofp %c0_i32_2 : i32 to f32
    %12 = vector.shape_cast %8 : vector<1x128xi1> to vector<1x128xi1>
    %13 = vector.broadcast %12 : vector<1x128xi1> to vector<4x128xi1>
    %14 = vector.broadcast %11 : f32 to vector<4x128xf32>
    %15 = arith.select %13, %10, %14 : vector<4x128xi1>, vector<4x128xf32>
    %c128_i32_3 = arith.constant 128 : i32
    %16 = arith.subi %0, %c128_i32_3 : i32
    %17 = tpu.iota {dimensions = array<i32: 1>} : vector<1x128xi32>
    %18 = vector.broadcast %16 : i32 to vector<1x128xi32>
    %19 = arith.addi %17, %18 : vector<1x128xi32>
    %c0_i32_4 = arith.constant 0 : i32
    %20 = vector.broadcast %c0_i32_4 : i32 to vector<1x128xi32>
    %21 = arith.cmpi sge, %19, %20 : vector<1x128xi32>
    %c16_i32_5 = arith.constant 16 : i32
    %22 = vector.broadcast %c16_i32_5 : i32 to vector<1x128xi32>
    %23 = arith.cmpi slt, %19, %22 : vector<1x128xi32>
    %24 = arith.andi %21, %23 : vector<1x128xi1>
    %c0_6 = arith.constant 0 : index
    %c0_7 = arith.constant 0 : index
    %c0_8 = arith.constant 0 : index
    %25 = vector.load %arg3[%c0_6, %c0_7, %c0_8] : memref<1x4x128xf32, #tpu.memory_space<vmem>>, vector<1x4x128xf32>
    %26 = vector.shape_cast %25 : vector<1x4x128xf32> to vector<4x128xf32>
    %c0_i32_9 = arith.constant 0 : i32
    %27 = arith.sitofp %c0_i32_9 : i32 to f32
    %28 = vector.shape_cast %24 : vector<1x128xi1> to vector<1x128xi1>
    %29 = vector.broadcast %28 : vector<1x128xi1> to vector<4x128xi1>
    %30 = vector.broadcast %27 : f32 to vector<4x128xf32>
    %31 = arith.select %29, %26, %30 : vector<4x128xi1>, vector<4x128xf32>
    %c128_i32_10 = arith.constant 128 : i32
    %32 = arith.addi %0, %c128_i32_10 : i32
    %33 = tpu.iota {dimensions = array<i32: 1>} : vector<1x128xi32>
    %34 = vector.broadcast %32 : i32 to vector<1x128xi32>
    %35 = arith.addi %33, %34 : vector<1x128xi32>
    %c0_i32_11 = arith.constant 0 : i32
    %36 = vector.broadcast %c0_i32_11 : i32 to vector<1x128xi32>
    %37 = arith.cmpi sge, %35, %36 : vector<1x128xi32>
    %c16_i32_12 = arith.constant 16 : i32
    %38 = vector.broadcast %c16_i32_12 : i32 to vector<1x128xi32>
    %39 = arith.cmpi slt, %35, %38 : vector<1x128xi32>
    %40 = arith.andi %37, %39 : vector<1x128xi1>
    %c0_13 = arith.constant 0 : index
    %c0_14 = arith.constant 0 : index
    %c0_15 = arith.constant 0 : index
    %41 = vector.load %arg5[%c0_13, %c0_14, %c0_15] : memref<1x4x128xf32, #tpu.memory_space<vmem>>, vector<1x4x128xf32>
    %42 = vector.shape_cast %41 : vector<1x4x128xf32> to vector<4x128xf32>
    %c0_i32_16 = arith.constant 0 : i32
    %43 = arith.sitofp %c0_i32_16 : i32 to f32
    %44 = vector.shape_cast %40 : vector<1x128xi1> to vector<1x128xi1>
    %45 = vector.broadcast %44 : vector<1x128xi1> to vector<4x128xi1>
    %46 = vector.broadcast %43 : f32 to vector<4x128xf32>
    %47 = arith.select %45, %42, %46 : vector<4x128xi1>, vector<4x128xf32>
    %48 = vector.extract_strided_slice %31 {offsets = [0, 127], sizes = [4, 1], strides = [1, 1]} : vector<4x128xf32> to vector<4x1xf32>
    %49 = vector.extract_strided_slice %15 {offsets = [0, 0], sizes = [4, 127], strides = [1, 1]} : vector<4x128xf32> to vector<4x127xf32>
    %50 = tpu.concatenate %48, %49 in 1 : vector<4x1xf32>, vector<4x127xf32> -> vector<4x128xf32>
    %51 = vector.extract_strided_slice %15 {offsets = [0, 1], sizes = [4, 127], strides = [1, 1]} : vector<4x128xf32> to vector<4x127xf32>
    %52 = vector.extract_strided_slice %47 {offsets = [0, 0], sizes = [4, 1], strides = [1, 1]} : vector<4x128xf32> to vector<4x1xf32>
    %53 = tpu.concatenate %51, %52 in 1 : vector<4x127xf32>, vector<4x1xf32> -> vector<4x128xf32>
    %54 = tpu.concatenate %50, %15, %53 in 0 : vector<4x128xf32>, vector<4x128xf32>, vector<4x128xf32> -> vector<12x128xf32>
    %c0_17 = arith.constant 0 : index
    %c0_18 = arith.constant 0 : index
    %55 = vector.load %arg6[%c0_17, %c0_18] : memref<8x12xf32, #tpu.memory_space<vmem>>, vector<8x12xf32>
    %cst = arith.constant dense<0.000000e+00> : vector<8x128xf32>
    %56 = tpu.matmul %55, %54, %cst {dimension_numbers = #tpu.dot_dimension_numbers<[1], [0], [0], [1], [0, 0, 1, 1], [], []>} : vector<8x12xf32>, vector<12x128xf32>, vector<8x128xf32> -> vector<8x128xf32>
    %c0_19 = arith.constant 0 : index
    %c0_20 = arith.constant 0 : index
    %57 = vector.load %arg7[%c0_19, %c0_20] : memref<8x1xf32, #tpu.memory_space<vmem>>, vector<8x1xf32>
    %58 = vector.broadcast %57 : vector<8x1xf32> to vector<8x128xf32>
    %59 = arith.addf %56, %58 : vector<8x128xf32>
    %c0_21 = arith.constant 0 : index
    %c0_22 = arith.constant 0 : index
    %c0_23 = arith.constant 0 : index
    %60 = vector.load %arg8[%c0_21, %c0_22, %c0_23] : memref<1x8x128xf32, #tpu.memory_space<vmem>>, vector<1x8x128xf32>
    %61 = vector.shape_cast %60 : vector<1x8x128xf32> to vector<8x128xf32>
    %62 = vector.shape_cast %59 : vector<8x128xf32> to vector<1x8x128xf32>
    tpu.vector_store %arg8[%c0_21, %c0_22, %c0_23], %62 {strides = array<i32>} : memref<1x8x128xf32, #tpu.memory_space<vmem>>, vector<1x8x128xf32>,
    return
  }
  func.func @transform_0(%arg0: i32, %arg1: i32, %arg2: i32) -> (i32, i32, i32) {
    %c1_i32 = arith.constant 1 : i32
    %0 = arith.muli %arg2, %c1_i32 : i32
    %c1_i32_0 = arith.constant 1 : i32
    %1 = arith.subi %0, %c1_i32_0 : i32
    %c0_i32 = arith.constant 0 : i32
    %c0_i32_1 = arith.constant 0 : i32
    %2 = arith.maxsi %c0_i32, %1 : i32
    %3 = arith.minsi %c0_i32_1, %2 : i32
    %c0_i32_2 = arith.constant 0 : i32
    %c0_i32_3 = arith.constant 0 : i32
    return %arg0, %c0_i32_2, %3 : i32, i32, i32
  }
  func.func @transform_1(%arg0: i32, %arg1: i32, %arg2: i32) -> (i32, i32, i32) {
    %c0_i32 = arith.constant 0 : i32
    %0 = arith.minsi %arg2, %c0_i32 : i32
    %c0_i32_0 = arith.constant 0 : i32
    %c0_i32_1 = arith.constant 0 : i32
    return %arg0, %c0_i32_0, %0 : i32, i32, i32
  }
  func.func @transform_2(%arg0: i32, %arg1: i32, %arg2: i32) -> (i32, i32, i32) {
    %c1_i32 = arith.constant 1 : i32
    %0 = arith.addi %arg2, %c1_i32 : i32
    %c1_i32_0 = arith.constant 1 : i32
    %1 = arith.muli %0, %c1_i32_0 : i32
    %c0_i32 = arith.constant 0 : i32
    %2 = arith.minsi %1, %c0_i32 : i32
    %c0_i32_1 = arith.constant 0 : i32
    %c0_i32_2 = arith.constant 0 : i32
    return %arg0, %c0_i32_1, %2 : i32, i32, i32
  }
  func.func @transform_3(%arg0: i32, %arg1: i32, %arg2: i32) -> (i32, i32) {
    %c0_i32 = arith.constant 0 : i32
    %c0_i32_0 = arith.constant 0 : i32
    return %arg1, %c0_i32 : i32, i32
  }
  func.func @transform_4(%arg0: i32, %arg1: i32, %arg2: i32) -> (i32, i32) {
    %c0_i32 = arith.constant 0 : i32
    %c0_i32_0 = arith.constant 0 : i32
    return %arg1, %c0_i32 : i32, i32
  }
  func.func @transform_5(%arg0: i32, %arg1: i32, %arg2: i32) -> (i32, i32, i32) {
    %c0_i32 = arith.constant 0 : i32
    return %arg0, %arg1, %arg2 : i32, i32, i32
  }
}

</mosaic_0001>

<llo_original>
// kernel: tpu_custom_call.1
$region0: #{tpu_custom_call.1}
  #allocation0 [shape = 'u32[]', space=smem, size = 0x4, offset = 0x4, fixed_abs, tag = 'smem constant byte address 0x4 - core index']
  #allocation1 [shape = 'u32[144,128]{1,0:T(1,128)}', space=vmem, size = 0x12000, scoped, tag = 'internal scratch']
  %s0 = inlined_call_operand.vmem [shape: f32[2,4,16], index: 0, kind: input, shape index: {}]
  %s1 = inlined_call_operand.hbm [shape: f32[2,4,16], index: 1, kind: input, shape index: {}]
  %s2 = inlined_call_operand.vmem [shape: f32[2,4,16], index: 2, kind: input, shape index: {}]
  %s3 = inlined_call_operand.hbm [shape: f32[8,12], index: 3, kind: input, shape index: {}]
  %s4 = inlined_call_operand.vmem [shape: f32[8,1], index: 4, kind: input, shape index: {}]
  %s5 = inlined_call_operand.hbm [shape: f32[2,8,16], index: 5, kind: output, shape index: {}]
  %s6 = sld [smem:[#allocation0]]
  $region61: #{tpu_custom_call.1} parent=0
    _
  %s8 = ssub.s32 1, %s6
  %s9 = scalar_select 0, %s8, %s6
  $region1: #{tpu_custom_call.1} parent=0
    #allocation2 [shape = 'u8[4096]{0}', space=vmem, size = 0x1000, scoped, tag = 'input window, operand 1']
    #allocation3 [shape = 's32[2]{0}', space=sflag, size = 0x8, scoped, tag = 'scoped memory for tpu_custom_call.1']
    #allocation4 [shape = 's32[2]{0}', space=sflag, size = 0x8, scoped, tag = 'scoped memory for tpu_custom_call.1']
    #allocation5 [shape = 'u8[4096]{0}', space=vmem, size = 0x1000, scoped, tag = 'input window, operand 3, single buffered']
    #allocation6 [shape = 's32[1]{0}', space=sflag, size = 0x4, scoped, tag = 'scoped memory for tpu_custom_call.1']
    #allocation7 [shape = 'u8[8192]{0}', space=vmem, size = 0x2000, scoped, tag = 'output window, operand 0']
    %10 = vsyncpa [#allocation3], 0
    %s11 = scalar_lea.sflag [#allocation3], 1
    %12 = vsyncpa %s11, 0
    %13 = vsyncpa [#allocation6], 0
    %14 = vsyncpa [#allocation4], 0
    %s15 = scalar_lea.sflag [#allocation4], 1
    %16 = vsyncpa %s15, 0
    loop: start=0, step=1, limit=4
    $region2: #{tpu_custom_call.1} parent=1 // loop_pre_header
      _
    $region3: #{tpu_custom_call.1} parent=1 // loop_header
      %s18 = sphi 0, %s22
      %p19 = scmp.ge.s32.totalorder %s18, 4
      %s25 = sphi 0, %s44
      %s26 = sphi 0, %s40
      %s27 = sphi 0, %s36
      %s28 = sphi 0, %s25
      %s29 = sphi 0, %s26
      %s30 = sphi 0, %s27
      %s31 = sphi 0, %s28
      %s32 = sphi 0, %s29
      %s33 = sphi 0, %s30
      %s59 = sphi 0, %s61
      %s62 = sphi 0, %s59
      %s63 = sphi 0, %s62
      %s79 = sphi 0, %s63
      %s91 = sphi 0, %s93
      %s94 = sphi 0, %s91
      %s95 = sphi 0, %s94
      %s111 = sphi 0, %s95
      %s125 = sphi 0, %s127
      %s128 = sphi 0, %s125
      %s129 = sphi 0, %s128
      %s145 = sphi 0, %s129
      %s151 = sphi 0, %s153
      %s154 = sphi 0, %s151
      %s155 = sphi 0, %s154
      %s171 = sphi 0, %s155
      %s177 = sphi 0, %s179
      %s180 = sphi 0, %s177
      %s181 = sphi 0, %s180
      %s197 = sphi 0, %s181
      %s207 = sphi 0, %s209
      %s210 = sphi 0, %s207
      %s211 = sphi 0, %s210
      %s227 = sphi 0, %s211
    $region4: #{tpu_custom_call.1} parent=1 // loop_header_branch
      %21 = sbr.rel (%p19) target = $region8
    $region5: #{tpu_custom_call.1} parent=1 // loop_body
      %s23 = ssub.s32 %s18, 1
      %s24 = ssub.s32 %s18, 2
      %s34 = sadd.s32 1, %s27
      %p35 = scmp.ge.s32.totalorder %s34, 1
      %s36 = scalar_select %p35, 0, %s34
      %s37 = sadd.s32 1, %s26
      %s38 = scalar_select %p35, %s37, %s26
      %p39 = scmp.ge.s32.totalorder %s38, 1
      %s40 = scalar_select %p39, 0, %s38
      %s41 = sadd.s32 1, %s25
      %s42 = scalar_select %p39, %s41, %s25
      %p43 = scmp.ge.s32.totalorder %s42, 2
      %s44 = scalar_select %p43, 0, %s42
      %s45 = ssub.s32 %s27, 1
      %p46 = scmp.gt.s32.totalorder %s45, 0
      %s47 = scalar_select %p46, %s45, 0
      %p48 = scmp.lt.s32.totalorder %s47, 0
      %s49 = scalar_select %p48, %s47, 0
      %s50 = ssub.s32 %s36, 1
      %p51 = scmp.gt.s32.totalorder %s50, 0
      %s52 = scalar_select %p51, %s50, 0
      %p53 = scmp.lt.s32.totalorder %s52, 0
      %s54 = scalar_select %p53, %s52, 0
      %s55 = ssub.s32 %s25, %s44
      %s56 = ssub.s32 %s49, %s54
      %s57 = sor.u32 %s55, %s56
      %p58 = scmp.eq.s32.totalorder %s57, 0
      %s60 = sadd.s32 %s59, 1
      %s61 = scalar_select %p58, %s59, %s60
      %p64 = pneg %p58
      %p65 = scmp.eq.s32.totalorder %s18, 1
      %p66 = por %p64, %p65
      %p67 = scmp.ne.s32.totalorder %s59, %s62
      %p68 = scmp.eq.s32.totalorder %s18, 0
      %p69 = por %p67, %p68
      %p70 = scmp.ne.s32.totalorder %s59, %s62
      %p71 = scmp.eq.s32.totalorder %s23, 1
      %p72 = por %p70, %p71
      %p73 = scmp.ne.s32.totalorder %s62, %s63
      %p74 = scmp.eq.s32.totalorder %s23, 0
      %p75 = por %p73, %p74
      %p76 = scmp.ne.s32.totalorder %s62, %s63
      %p77 = scmp.eq.s32.totalorder %s24, 1
      %p78 = por %p76, %p77
      %p80 = scmp.ne.s32.totalorder %s63, %s79
      %p81 = scmp.eq.s32.totalorder %s24, 0
      %p82 = por %p80, %p81
      %p83 = scmp.lt.s32.totalorder %s27, 0
      %s84 = scalar_select %p83, %s27, 0
      %p85 = scmp.lt.s32.totalorder %s36, 0
      %s86 = scalar_select %p85, %s36, 0
      %s87 = ssub.s32 %s25, %s44
      %s88 = ssub.s32 %s84, %s86
      %s89 = sor.u32 %s87, %s88
      %p90 = scmp.eq.s32.totalorder %s89, 0
      %s92 = sadd.s32 %s91, 1
      %s93 = scalar_select %p90, %s91, %s92
      %p96 = pneg %p90
      %p97 = scmp.eq.s32.totalorder %s18, 1
      %p98 = por %p96, %p97
      %p99 = scmp.ne.s32.totalorder %s91, %s94
      %p100 = scmp.eq.s32.totalorder %s18, 0
      %p101 = por %p99, %p100
      %p102 = scmp.ne.s32.totalorder %s91, %s94
      %p103 = scmp.eq.s32.totalorder %s23, 1
      %p104 = por %p102, %p103
      %p105 = scmp.ne.s32.totalorder %s94, %s95
      %p106 = scmp.eq.s32.totalorder %s23, 0
      %p107 = por %p105, %p106
      %p108 = scmp.ne.s32.totalorder %s94, %s95
      %p109 = scmp.eq.s32.totalorder %s24, 1
      %p110 = por %p108, %p109
      %p112 = scmp.ne.s32.totalorder %s95, %s111
      %p113 = scmp.eq.s32.totalorder %s24, 0
      %p114 = por %p112, %p113
      %s115 = sadd.s32 %s27, 1
      %p116 = scmp.lt.s32.totalorder %s115, 0
      %s117 = scalar_select %p116, %s115, 0
      %s118 = sadd.s32 %s36, 1
      %p119 = scmp.lt.s32.totalorder %s118, 0
      %s120 = scalar_select %p119, %s118, 0
      %s121 = ssub.s32 %s25, %s44
      %s122 = ssub.s32 %s117, %s120
      %s123 = sor.u32 %s121, %s122
      %p124 = scmp.eq.s32.totalorder %s123, 0
      %s126 = sadd.s32 %s125, 1
      %s127 = scalar_select %p124, %s125, %s126
      %p130 = pneg %p124
      %p131 = scmp.eq.s32.totalorder %s18, 1
      %p132 = por %p130, %p131
      %p133 = scmp.ne.s32.totalorder %s125, %s128
      %p134 = scmp.eq.s32.totalorder %s18, 0
      %p135 = por %p133, %p134
      %p136 = scmp.ne.s32.totalorder %s125, %s128
      %p137 = scmp.eq.s32.totalorder %s23, 1
      %p138 = por %p136, %p137
      %p139 = scmp.ne.s32.totalorder %s128, %s129
      %p140 = scmp.eq.s32.totalorder %s23, 0
      %p141 = por %p139, %p140
      %p142 = scmp.ne.s32.totalorder %s128, %s129
      %p143 = scmp.eq.s32.totalorder %s24, 1
      %p144 = por %p142, %p143
      %p146 = scmp.ne.s32.totalorder %s129, %s145
      %p147 = scmp.eq.s32.totalorder %s24, 0
      %p148 = por %p146, %p147
      %s149 = ssub.s32 %s26, %s40
      %p150 = scmp.eq.s32.totalorder %s149, 0
      %s152 = sadd.s32 %s151, 1
      %s153 = scalar_select %p150, %s151, %s152
      %p156 = pneg %p150
      %p157 = scmp.eq.s32.totalorder %s18, 1
      %p158 = por %p156, %p157
      %p159 = scmp.ne.s32.totalorder %s151, %s154
      %p160 = scmp.eq.s32.totalorder %s18, 0
      %p161 = por %p159, %p160
      %p162 = scmp.ne.s32.totalorder %s151, %s154
      %p163 = scmp.eq.s32.totalorder %s23, 1
      %p164 = por %p162, %p163
      %p165 = scmp.ne.s32.totalorder %s154, %s155
      %p166 = scmp.eq.s32.totalorder %s23, 0
      %p167 = por %p165, %p166
      %p168 = scmp.ne.s32.totalorder %s154, %s155
      %p169 = scmp.eq.s32.totalorder %s24, 1
      %p170 = por %p168, %p169
      %p172 = scmp.ne.s32.totalorder %s155, %s171
      %p173 = scmp.eq.s32.totalorder %s24, 0
      %p174 = por %p172, %p173
      %s175 = ssub.s32 %s26, %s40
      %p176 = scmp.eq.s32.totalorder %s175, 0
      %s178 = sadd.s32 %s177, 1
      %s179 = scalar_select %p176, %s177, %s178
      %p182 = pneg %p176
      %p183 = scmp.eq.s32.totalorder %s18, 1
      %p184 = por %p182, %p183
      %p185 = scmp.ne.s32.totalorder %s177, %s180
      %p186 = scmp.eq.s32.totalorder %s18, 0
      %p187 = por %p185, %p186
      %p188 = scmp.ne.s32.totalorder %s177, %s180
      %p189 = scmp.eq.s32.totalorder %s23, 1
      %p190 = por %p188, %p189
      %p191 = scmp.ne.s32.totalorder %s180, %s181
      %p192 = scmp.eq.s32.totalorder %s23, 0
      %p193 = por %p191, %p192
      %p194 = scmp.ne.s32.totalorder %s180, %s181
      %p195 = scmp.eq.s32.totalorder %s24, 1
      %p196 = por %p194, %p195
      %p198 = scmp.ne.s32.totalorder %s181, %s197
      %p199 = scmp.eq.s32.totalorder %s24, 0
      %p200 = por %p198, %p199
      %s201 = ssub.s32 %s25, %s44
      %s202 = ssub.s32 %s26, %s40
      %s203 = sor.u32 %s201, %s202
      %s204 = ssub.s32 %s27, %s36
      %s205 = sor.u32 %s203, %s204
      %p206 = scmp.eq.s32.totalorder %s205, 0
      %s208 = sadd.s32 %s207, 1
      %s209 = scalar_select %p206, %s207, %s208
      %p212 = pneg %p206
      %p213 = scmp.eq.s32.totalorder %s18, 1
      %p214 = por %p212, %p213
      %p215 = scmp.ne.s32.totalorder %s207, %s210
      %p216 = scmp.eq.s32.totalorder %s18, 0
      %p217 = por %p215, %p216
      %p218 = scmp.ne.s32.totalorder %s207, %s210
      %p219 = scmp.eq.s32.totalorder %s23, 1
      %p220 = por %p218, %p219
      %p221 = scmp.ne.s32.totalorder %s210, %s211
      %p222 = scmp.eq.s32.totalorder %s23, 0
      %p223 = por %p221, %p222
      %p224 = scmp.ne.s32.totalorder %s210, %s211
      %p225 = scmp.eq.s32.totalorder %s24, 1
      %p226 = por %p224, %p225
      %p228 = scmp.ne.s32.totalorder %s211, %s227
      %p229 = scmp.eq.s32.totalorder %s24, 0
      %p230 = por %p228, %p229
      %p231 = scmp.le.s32.totalorder 1, %s18
      %p232 = scmp.lt.s32.totalorder %s18, 3
      %p233 = pnand %p231, %p232
      %p234 = pneg %p233
      // Predicated region
      $region9: #{tpu_custom_call.1} parent=5 // pred_check
        _
      $region10: #{tpu_custom_call.1} parent=5 // pred_check_branch
        %236 = sbr.rel (%p233) target = $region12
      $region11: #{tpu_custom_call.1} parent=5 // pred_region
        %s237 = ssub.s32 %s18, 1
        // Predicated region
        $region13: #{tpu_custom_call.1} parent=11 // pred_check
          %p238 = pneg %p167
        $region14: #{tpu_custom_call.1} parent=11 // pred_check_branch
          %240 = sbr.rel (%p238) target = $region16
        $region15: #{tpu_custom_call.1} parent=11 // pred_region
          %s242 = ssub.s32 128, 128
          %243 = vsyncadd [#allocation6], %s242
          %s244 = smul.addr %s29, 128
          %s245 = scalar_lea.hbm %s3, %s244
          %s247 = sshll.u32 [#allocation5], 4
          %s248 = int_to_ptr.vmem [resolvable:$true] %s247
          %250 = dma.hbm_to_vmem [thread:$0]  %s245, 128, %s248, [#allocation6]
        $region16: #{tpu_custom_call.1} parent=11 // pred_fallthru
          _
        // Predicated region
        $region17: #{tpu_custom_call.1} parent=11 // pred_check
          %p251 = pneg %p193
        $region18: #{tpu_custom_call.1} parent=11 // pred_check_branch
          %253 = sbr.rel (%p251) target = $region20
        $region19: #{tpu_custom_call.1} parent=11 // pred_region
          %p254 = scmp.lt.s32.totalorder %s29, 0
          %s255 = scalar_select %p254, %s29, 0
          %s256 = smul.addr %s255, 8
          %s257 = scalar_lea.vmem %s4, %s256
        $region20: #{tpu_custom_call.1} parent=11 // pred_fallthru
          _
      $region12: #{tpu_custom_call.1} parent=5 // pred_fallthru
        _
      %p258 = scmp.lt.s32.totalorder %s18, 2
      // Predicated region
      $region21: #{tpu_custom_call.1} parent=5 // pred_check
        %p259 = pneg %p258
      $region22: #{tpu_custom_call.1} parent=5 // pred_check_branch
        %261 = sbr.rel (%p259) target = $region24
      $region23: #{tpu_custom_call.1} parent=5 // pred_region
        // Predicated region
        $region25: #{tpu_custom_call.1} parent=23 // pred_check
          %p262 = pneg %p69
        $region26: #{tpu_custom_call.1} parent=23 // pred_check_branch
          %264 = sbr.rel (%p262) target = $region28
        $region27: #{tpu_custom_call.1} parent=23 // pred_region
          %s265 = ssub.s32 %s27, 1
          %p266 = scmp.gt.s32.totalorder %s265, 0
          %s267 = scalar_select %p266, %s265, 0
          %p268 = scmp.lt.s32.totalorder %s267, 0
          %s269 = scalar_select %p268, %s267, 0
          %p270 = scmp.lt.s32.totalorder %s25, 1
          %s271 = scalar_select %p270, %s25, 1
          %p272 = scmp.lt.s32.totalorder %s269, 0
          %s273 = scalar_select %p272, %s269, 0
          %s274 = sadd.s32 %s273, %s271
          %s275 = smul.addr %s274, 4
          %s276 = scalar_lea.vmem %s0, %s275
          %s277 = ssub.s32 %s27, 1
          %p278 = scmp.gt.s32.totalorder %s277, 0
          %s279 = scalar_select %p278, %s277, 0
          %p280 = scmp.lt.s32.totalorder %s279, 0
          %s281 = scalar_select %p280, %s279, 0
        $region28: #{tpu_custom_call.1} parent=23 // pred_fallthru
          _
        // Predicated region
        $region29: #{tpu_custom_call.1} parent=23 // pred_check
          %p282 = pneg %p101
        $region30: #{tpu_custom_call.1} parent=23 // pred_check_branch
          %284 = sbr.rel (%p282) target = $region32
        $region31: #{tpu_custom_call.1} parent=23 // pred_region
          %s285 = sand.u32 %s91, 1
          %s286 = scalar_lea.sflag [#allocation3], %s285
          %s287 = sand.u32 %s91, 1
          %s288 = smul.addr %s287, 4
          %s289 = scalar_lea.vmem [#allocation2], %s288
          %p290 = scmp.lt.s32.totalorder %s27, 0
          %s291 = scalar_select %p290, %s27, 0
          %s293 = ssub.s32 64, 64
          %294 = vsyncadd %s286, %s293
          %s295 = sadd.s32 %s291, %s25
          %s296 = smul.addr %s295, 64
          %s297 = scalar_lea.hbm %s1, %s296
          %s299 = sshll.u32 %s289, 4
          %s300 = int_to_ptr.vmem [resolvable:$true] %s299
          %302 = dma.hbm_to_vmem [thread:$0]  %s297, 64, %s300, %s286
        $region32: #{tpu_custom_call.1} parent=23 // pred_fallthru
          _
        // Predicated region
        $region33: #{tpu_custom_call.1} parent=23 // pred_check
          %p303 = pneg %p135
        $region34: #{tpu_custom_call.1} parent=23 // pred_check_branch
          %305 = sbr.rel (%p303) target = $region36
        $region35: #{tpu_custom_call.1} parent=23 // pred_region
          %s306 = sadd.s32 %s27, 1
          %p307 = scmp.lt.s32.totalorder %s306, 0
          %s308 = scalar_select %p307, %s306, 0
          %p309 = scmp.lt.s32.totalorder %s25, 1
          %s310 = scalar_select %p309, %s25, 1
          %p311 = scmp.lt.s32.totalorder %s308, 0
          %s312 = scalar_select %p311, %s308, 0
          %s313 = sadd.s32 %s312, %s310
          %s314 = smul.addr %s313, 4
          %s315 = scalar_lea.vmem %s2, %s314
          %s316 = sadd.s32 %s27, 1
          %p317 = scmp.lt.s32.totalorder %s316, 0
          %s318 = scalar_select %p317, %s316, 0
        $region36: #{tpu_custom_call.1} parent=23 // pred_fallthru
          _
      $region24: #{tpu_custom_call.1} parent=5 // pred_fallthru
        _
      %p319 = scmp.le.s32.totalorder 1, %s18
      %p320 = scmp.lt.s32.totalorder %s18, 3
      %p321 = pnand %p319, %p320
      %p322 = pneg %p321
      // Predicated region
      $region37: #{tpu_custom_call.1} parent=5 // pred_check
        _
      $region38: #{tpu_custom_call.1} parent=5 // pred_check_branch
        %324 = sbr.rel (%p321) target = $region40
      $region39: #{tpu_custom_call.1} parent=5 // pred_region
        %s325 = ssub.s32 %s18, 1
        %s326 = sand.u32 %s94, 1
        %s327 = scalar_lea.sflag [#allocation3], %s326
        %s328 = sand.u32 %s94, 1
        %s329 = smul.addr %s328, 4
        %s330 = scalar_lea.vmem [#allocation2], %s329
        // Predicated region
        $region41: #{tpu_custom_call.1} parent=39 // pred_check
          %p331 = pneg %p107
        $region42: #{tpu_custom_call.1} parent=39 // pred_check_branch
          %333 = sbr.rel (%p331) target = $region44
        $region43: #{tpu_custom_call.1} parent=39 // pred_region
          %334 = dma.done %s327, 64
        $region44: #{tpu_custom_call.1} parent=39 // pred_fallthru
          _
        // Predicated region
        $region45: #{tpu_custom_call.1} parent=39 // pred_check
          %p335 = pneg %p167
        $region46: #{tpu_custom_call.1} parent=39 // pred_check_branch
          %337 = sbr.rel (%p335) target = $region48
        $region47: #{tpu_custom_call.1} parent=39 // pred_region
          %338 = dma.done [#allocation6], 128
        $region48: #{tpu_custom_call.1} parent=39 // pred_fallthru
          _
        %s339 = ssub.s32 %s30, 1
        %p340 = scmp.gt.s32.totalorder %s339, 0
        %s341 = scalar_select %p340, %s339, 0
        %p342 = scmp.lt.s32.totalorder %s341, 0
        %s343 = scalar_select %p342, %s341, 0
        %p344 = scmp.lt.s32.totalorder %s28, 1
        %s345 = scalar_select %p344, %s28, 1
        %p346 = scmp.lt.s32.totalorder %s343, 0
        %s347 = scalar_select %p346, %s343, 0
        %s348 = sadd.s32 %s347, %s345
        %s349 = smul.addr %s348, 4
        %s350 = scalar_lea.vmem %s0, %s349
        %p351 = pneg %p75
        %p352 = pneg %p72
        %s353 = sand.u32 %s94, 1
        %s354 = scalar_lea.sflag [#allocation3], %s353
        %s355 = sand.u32 %s94, 1
        %s356 = smul.addr %s355, 4
        %s357 = scalar_lea.vmem [#allocation2], %s356
        %p358 = pneg %p107
        %p359 = pneg %p104
        %s360 = sadd.s32 %s30, 1
        %p361 = scmp.lt.s32.totalorder %s360, 0
        %s362 = scalar_select %p361, %s360, 0
        %p363 = scmp.lt.s32.totalorder %s28, 1
        %s364 = scalar_select %p363, %s28, 1
        %p365 = scmp.lt.s32.totalorder %s362, 0
        %s366 = scalar_select %p365, %s362, 0
        %s367 = sadd.s32 %s366, %s364
        %s368 = smul.addr %s367, 4
        %s369 = scalar_lea.vmem %s2, %s368
        %p370 = pneg %p141
        %p371 = pneg %p138
        %p372 = pneg %p167
        %p373 = pneg %p164
        %p374 = scmp.lt.s32.totalorder %s29, 0
        %s375 = scalar_select %p374, %s29, 0
        %s376 = smul.addr %s375, 8
        %s377 = scalar_lea.vmem %s4, %s376
        %p378 = pneg %p193
        %p379 = pneg %p190
        %p380 = pneg %p223
        %p381 = pneg %p220
        %s382 = sand.u32 %s210, 1
        %s383 = scalar_lea.sflag [#allocation4], %s382
        %s384 = sand.u32 %s210, 1
        %s385 = smul.addr %s384, 8
        %s386 = scalar_lea.vmem [#allocation7], %s385
        %s387 = ssub.s32 %s30, 1
        %p388 = scmp.gt.s32.totalorder %s387, 0
        %s389 = scalar_select %p388, %s387, 0
        %p390 = scmp.lt.s32.totalorder %s389, 0
        %s391 = scalar_select %p390, %s389, 0
        %p392 = scmp.lt.s32.totalorder %s28, 1
        %s393 = scalar_select %p392, %s28, 1
        %p394 = scmp.lt.s32.totalorder %s391, 0
        %s395 = scalar_select %p394, %s391, 0
        %s396 = sadd.s32 %s395, %s393
        %s397 = smul.addr %s396, 4
        %s398 = scalar_lea.vmem %s0, %s397
        %s399 = ssub.s32 %s30, 1
        %p400 = scmp.gt.s32.totalorder %s399, 0
        %s401 = scalar_select %p400, %s399, 0
        %p402 = scmp.lt.s32.totalorder %s401, 0
        %s403 = scalar_select %p402, %s401, 0
        %p404 = scmp.lt.s32.totalorder %s30, 0
        %s405 = scalar_select %p404, %s30, 0
        %s406 = sadd.s32 %s30, 1
        %p407 = scmp.lt.s32.totalorder %s406, 0
        %s408 = scalar_select %p407, %s406, 0
        %p409 = scmp.lt.s32.totalorder %s28, 1
        %s410 = scalar_select %p409, %s28, 1
        %p411 = scmp.lt.s32.totalorder %s408, 0
        %s412 = scalar_select %p411, %s408, 0
        %s413 = sadd.s32 %s412, %s410
        %s414 = smul.addr %s413, 4
        %s415 = scalar_lea.vmem %s2, %s414
        %s416 = sadd.s32 %s30, 1
        %p417 = scmp.lt.s32.totalorder %s416, 0
        %s418 = scalar_select %p417, %s416, 0
        %p419 = scmp.lt.s32.totalorder %s29, 0
        %s420 = scalar_select %p419, %s29, 0
        %s421 = smul.addr %s420, 8
        %s422 = scalar_lea.vmem %s4, %s421
        %s423 = smul.u32 %s30, 128
        %v424 = vlaneseq
        %v425 = vand.u32 %v424, 127
        %v426 = vstv %s423
        %v427 = vadd.s32 %v425, %v426
        %vm428 = vcmp.ge.s32.totalorder %v427, 0
        %vm429 = vcmp.lt.s32.totalorder %v427, 16
        %vm430 = vmand %vm428, %vm429
        %v431 = vld [vmem:[%s330] sm:$0xf]
        %v432 = vsel %vm430, 1, 0
        %vm433 = vcmp.eq.s32.totalorder %v432, 1
        %v434 = vsel %vm433, %v431, 0.0
        %s435 = ssub.s32 %s423, 128
        %v436 = vstv %s435
        %v437 = vadd.s32 %v425, %v436
        %vm438 = vcmp.ge.s32.totalorder %v437, 0
        %vm439 = vcmp.lt.s32.totalorder %v437, 16
        %vm440 = vmand %vm438, %vm439
        %v441 = vld [vmem:[%s398] sm:$0xf]
        %v442 = vsel %vm440, 1, 0
        %vm443 = vcmp.eq.s32.totalorder %v442, 1
        %v444 = vsel %vm443, %v441, 0.0
        %s445 = sadd.s32 %s423, 128
        %v446 = vstv %s445
        %v447 = vadd.s32 %v425, %v446
        %vm448 = vcmp.ge.s32.totalorder %v447, 0
        %vm449 = vcmp.lt.s32.totalorder %v447, 16
        %vm450 = vmand %vm448, %vm449
        %v451 = vld [vmem:[%s415] sm:$0xf]
        %v452 = vsel %vm450, 1, 0
        %vm453 = vcmp.eq.s32.totalorder %v452, 1
        %v454 = vsel %vm453, %v451, 0.0
        %456 = vrot.lane.b32.xlu0 %v444, 1
        %v457 = vpop.permute.xlu0 %456
        %460 = vrot.lane.b32.xlu0 %v434, 1
        %v461 = vpop.permute.xlu0 %460
        %vm463 = vcmask 7168
        %v464 = vsel %vm463, %v457, %v461
        %465 = vrot.lane.b32.xlu0 %v434, 127
        %v466 = vpop.permute.xlu0 %465
        %469 = vrot.lane.b32.xlu0 %v454, 127
        %v470 = vpop.permute.xlu0 %469
        %vm472 = vcmask 1039360
        %v473 = vsel %vm472, %v466, %v470
        %v474 = vrot.slane %v434, 4
        %vm476 = vcmask 1043456
        %v477 = vsel %vm476, %v464, %v474
        %v478 = vld [vmem:[#allocation5] sm:$0xff]
        %v479 = vld [vmem:[%s422] sm:$0xff]
        %481 = vset.pattern.permute.xlu0 0
        %482 = vperm.xlu0 %481, %v479
        %v483 = vpop.permute.xlu0 %482
        %vm485 = vcmask 97280
        %v487 = vsel %vm485, %v478, 0
        %v490 = vsel %vm476, %v473, 0
        %492 = vmatprep.subr.mxu0 0.0
        %493 = vmatpush1.msra.mxu0 %v477
        %494 = vmatprep.subr.mxu0 0.0
        %495 = vmatpush1.msra.mxu0 %v490
        %496 = vmatprep.subr.mxu0 0.0
        %497 = vmatpush1.msra.mxu0 0.0
        %498 = vmatprep.subr.mxu0 0.0
        %499 = vmatpush1.msra.mxu0 0.0
        %500 = vmatprep.subr.mxu0 0.0
        %501 = vmatpush1.msra.mxu0 0.0
        %502 = vmatprep.subr.mxu0 0.0
        %503 = vmatpush1.msra.mxu0 0.0
        %504 = vmatprep.subr.mxu0 0.0
        %505 = vmatpush1.msra.mxu0 0.0
        %506 = vmatprep.subr.mxu0 0.0
        %507 = vmatpush1.msra.mxu0 0.0
        %508 = vmatprep.subr.mxu0 0.0
        %509 = vmatpush1.msra.mxu0 0.0
        %510 = vmatprep.subr.mxu0 0.0
        %511 = vmatpush1.msra.mxu0 0.0
        %512 = vmatprep.subr.mxu0 0.0
        %513 = vmatpush1.msra.mxu0 0.0
        %514 = vmatprep.subr.mxu0 0.0
        %515 = vmatpush1.msra.mxu0 0.0
        %516 = vmatprep.subr.mxu0 0.0
        %517 = vmatpush1.msra.mxu0 0.0
        %518 = vmatprep.subr.mxu0 0.0
        %519 = vmatpush1.msra.mxu0 0.0
        %520 = vmatprep.subr.mxu0 0.0
        %521 = vmatpush1.msra.mxu0 0.0
        %522 = vmatprep.subr.mxu0 0.0
        %523 = vmatpush1.msra.mxu0 0.0
        %524 = vmatprep.subr.mxu0 0.0
        %525 = vmatpush1.msra.mxu0 0.0
        %526 = vmatprep.subr.mxu0 0.0
        %527 = vmatpush1.msra.mxu0 0.0
        %528 = vmatprep.subr.mxu0 0.0
        %529 = vmatpush1.msra.mxu0 0.0
        %530 = vmatprep.subr.mxu0 0.0
        %531 = vmatpush1.msra.mxu0 0.0
        %532 = vmatprep.subr.mxu0 0.0
        %533 = vmatpush1.msra.mxu0 0.0
        %534 = vmatprep.subr.mxu0 0.0
        %535 = vmatpush1.msra.mxu0 0.0
        %536 = vmatprep.subr.mxu0 0.0
        %537 = vmatpush1.msra.mxu0 0.0
        %538 = vmatprep.subr.mxu0 0.0
        %539 = vmatpush1.msra.mxu0 0.0
        %540 = vmatprep.subr.mxu0 0.0
        %541 = vmatpush1.msra.mxu0 0.0
        %542 = vmatprep.subr.mxu0 0.0
        %543 = vmatpush1.msra.mxu0 0.0
        %544 = vmatprep.subr.mxu0 0.0
        %545 = vmatpush1.msra.mxu0 0.0
        %546 = vmatprep.subr.mxu0 0.0
        %547 = vmatpush1.msra.mxu0 0.0
        %548 = vmatprep.subr.mxu0 0.0
        %549 = vmatpush1.msra.mxu0 0.0
        %550 = vmatprep.subr.mxu0 0.0
        %551 = vmatpush1.msra.mxu0 0.0
        %552 = vmatprep.subr.mxu0 0.0
        %553 = vmatpush1.msra.mxu0 0.0
        %554 = vmatprep.subr.mxu0 0.0
        %555 = vmatpush1.msra.mxu0 0.0
        %556 = vmatprep.mubr.f32.mxu0 0.0
        %557 = vmatmul.mubr.f32.gmra.mrb[0].mxu0 %v487
        %v558 = vpop.f32.mrb[0].mxu0
        %v559 = vadd.f32 %v483, %v558
        %v560 = vpop.f32.mrb[0].mxu0
        %561 = vdwg.mxu0
        %562 = vst [vmem:[%s386] sm:$0xff] %v559
        %s563 = sand.u32 %s210, 1
        %s564 = scalar_lea.sflag [#allocation4], %s563
        %s565 = sand.u32 %s210, 1
        %s566 = smul.addr %s565, 8
        %s567 = scalar_lea.vmem [#allocation7], %s566
        // Predicated region
        $region49: #{tpu_custom_call.1} parent=39 // pred_check
          %p568 = pneg %p220
        $region50: #{tpu_custom_call.1} parent=39 // pred_check_branch
          %570 = sbr.rel (%p568) target = $region52
        $region51: #{tpu_custom_call.1} parent=39 // pred_region
          %s572 = ssub.s32 128, 128
          %573 = vsyncadd %s564, %s572
          %s574 = sadd.s32 %s30, %s29
          %s575 = sadd.s32 %s574, %s28
          %s576 = smul.addr %s575, 128
          %s577 = scalar_lea.hbm %s5, %s576
          %s579 = sshll.u32 %s567, 4
          %s580 = int_to_ptr.vmem [resolvable:$true] %s579
          %582 = dma.vmem_to_hbm [thread:$0]  %s580, 128, %s577, %s564
        $region52: #{tpu_custom_call.1} parent=39 // pred_fallthru
          _
      $region40: #{tpu_custom_call.1} parent=5 // pred_fallthru
        _
      %p583 = scmp.le.s32.totalorder 2, %s18
      // Predicated region
      $region53: #{tpu_custom_call.1} parent=5 // pred_check
        %p584 = pneg %p583
      $region54: #{tpu_custom_call.1} parent=5 // pred_check_branch
        %586 = sbr.rel (%p584) target = $region56
      $region55: #{tpu_custom_call.1} parent=5 // pred_region
        %s587 = ssub.s32 %s18, 2
        // Predicated region
        $region57: #{tpu_custom_call.1} parent=55 // pred_check
          %p588 = pneg %p226
        $region58: #{tpu_custom_call.1} parent=55 // pred_check_branch
          %590 = sbr.rel (%p588) target = $region60
        $region59: #{tpu_custom_call.1} parent=55 // pred_region
          %s591 = sand.u32 %s211, 1
          %s592 = scalar_lea.sflag [#allocation4], %s591
          %s593 = sand.u32 %s211, 1
          %s594 = smul.addr %s593, 8
          %s595 = scalar_lea.vmem [#allocation7], %s594
          %596 = dma.done %s592, 128
        $region60: #{tpu_custom_call.1} parent=55 // pred_fallthru
          _
      $region56: #{tpu_custom_call.1} parent=5 // pred_fallthru
        _
    $region6: #{tpu_custom_call.1} parent=1 // loop_footer
      %s22 = sadd.s32 1, %s18
    $region7: #{tpu_custom_call.1} parent=1 // loop_footer_branch
      %17 = sbr.rel target = $region3
    $region8: #{tpu_custom_call.1} parent=1 // loop_exit
      _
    %597 = vsyncpa [#allocation3], 1
    %s598 = scalar_lea.sflag [#allocation3], 1
    %599 = vsyncpa %s598, 1
    %600 = vsyncpa [#allocation6], 1
    %601 = vsyncpa [#allocation4], 1
    %s602 = scalar_lea.sflag [#allocation4], 1
    %603 = vsyncpa %s602, 1

</llo_original>
